<compile_context>
chip_gen: v6e
topology: v6e:2x2x1
jax: 0.10.0
libtpu: 0.0.40
codegen_flags: <defaults>
</compile_context>

<pallas_src>
import jax
import jax.numpy as jnp
import numpy as np
from jax.experimental import pallas as pl
from jax.experimental.pallas import tpu as pltpu


def lstm_stack_kernel(x_ref, h0_ref, c0_ref, wih_ref, whh_ref, b_ref, hy_ref, cy_ref):
    """All layers in one invocation; fully VMEM-resident; no grid."""
    L, B, H = h0_ref.shape
    H3 = 3 * H

    # Off-critical-path: the h-path gate contribution for every layer depends only
    # on the kernel inputs (h0, w_hh, b), never on the recurrent chain, so compute
    # it all up front and let the scheduler hide it under the serial chain.
    gates_h = [
        jnp.dot(h0_ref[l].astype(jnp.float32), whh_ref[l],
                preferred_element_type=jnp.float32) + b_ref[l]
        for l in range(L)
    ]

    inp = x_ref[...].astype(jnp.float32)
    for l in range(L):
        # Serial (layer-to-layer recurrent) path: a single K=H dot.
        gates = jnp.dot(inp, wih_ref[l],
                        preferred_element_type=jnp.float32) + gates_h[l]

        # Gate columns were reordered in prepare_params() to [i, f, o, c]:
        # sigmoid over a contiguous (B, 3H) slab, ReLU over the trailing (B, H).
        # 3H = 384 and H = 128 are lane multiples -> free vreg-aligned views.
        sig = jax.nn.sigmoid(gates[:, :H3])
        i_g = sig[:, 0 * H:1 * H]
        f_g = sig[:, 1 * H:2 * H]
        o_g = sig[:, 2 * H:3 * H]
        c_g = jnp.maximum(gates[:, H3:], 0.0)

        ncx = f_g * c0_ref[l].astype(jnp.float32) + i_g * c_g
        nhx = o_g * jnp.tanh(ncx)

        cy_ref[l] = ncx.astype(cy_ref.dtype)
        hy_ref[l] = nhx.astype(hy_ref.dtype)
        inp = nhx  # dropout == identity (eval mode); unused after last layer (no store)


def prepare_params(w_ih, b_ih, w_hh, b_hh):
    """One-time parameter prep — call ONCE at init / outside any time-step loop.

    Reorders the 4H gate columns from PyTorch's [i, f, c, o] to [i, f, o, c] so the
    sigmoid region is contiguous, and pre-sums the two biases.
    """
    def reorder(t):
        H = t.shape[-1] // 4
        return jnp.concatenate(
            [t[..., :2 * H], t[..., 3 * H:], t[..., 2 * H:3 * H]], axis=-1)

    return reorder(w_ih), reorder(w_hh), reorder(b_ih + b_hh)


def lstm_cell_forward(x, h0, c0, w_ih_r, w_hh_r, b_r):
    """x: (B, H); h0/c0: (L, B, H); w_*_r: (L, H, 4H); b_r: (L, 1, 4H).

    Takes parameters already processed by prepare_params(). Requires
    input_size == hidden_size (as the PyTorch module implicitly does, since
    layer i>0 feeds nhx back into Linear(input_size, 4H)).
    """
    L, B, H = h0.shape
    vmem = pl.BlockSpec(memory_space=pltpu.MemorySpace.VMEM)
    out_shape = (jax.ShapeDtypeStruct((L, B, H), x.dtype),
                 jax.ShapeDtypeStruct((L, B, H), x.dtype))

    return pl.pallas_call(
        lstm_stack_kernel,
        out_shape=out_shape,
        in_specs=[vmem] * 6,
        out_specs=(vmem, vmem),
    )(x, h0, c0, w_ih_r, w_hh_r, b_r)


def ref_forward(x, h0, c0, w_ih, b_ih, w_hh, b_hh):
    """Pure-JAX reference mirroring the PyTorch forward (eval mode), original gate order."""
    L, B, H = h0.shape
    hy, cy = [], []
    inp = x
    for l in range(L):
        gates = inp @ w_ih[l] + b_ih[l] + h0[l] @ w_hh[l] + b_hh[l]
        i_g = jax.nn.sigmoid(gates[:, 0 * H:1 * H])
        f_g = jax.nn.sigmoid(gates[:, 1 * H:2 * H])
        c_g = jnp.maximum(gates[:, 2 * H:3 * H], 0.0)
        o_g = jax.nn.sigmoid(gates[:, 3 * H:4 * H])
        ncx = f_g * c0[l] + i_g * c_g
        nhx = o_g * jnp.tanh(ncx)
        cy.append(ncx)
        hy.append(nhx)
        inp = nhx
    return jnp.stack(hy, 0), jnp.stack(cy, 0)


if __name__ == "__main__":
    # Small, vreg-friendly shapes consistent with the module:
    # input_size == hidden_size == 128 (lane multiple), batch 8 (sublane multiple).
    B = 8
    H = 128
    L = 2

    key = jax.random.PRNGKey(0)
    keys = jax.random.split(key, 7)

    bound = 1.0 / np.sqrt(H)
    w_ih = jax.random.uniform(keys[0], (L, H, 4 * H), jnp.float32, -bound, bound)
    b_ih = jax.random.uniform(keys[1], (L, 1, 4 * H), jnp.float32, -bound, bound)
    w_hh = jax.random.uniform(keys[2], (L, H, 4 * H), jnp.float32, -bound, bound)
    b_hh = jax.random.uniform(keys[3], (L, 1, 4 * H), jnp.float32, -bound, bound)

    x = jax.random.normal(keys[4], (B, H), jnp.float32)
    h0 = jax.random.normal(keys[5], (L, B, H), jnp.float32)
    c0 = jax.random.normal(keys[6], (L, B, H), jnp.float32)

    # Param prep done once, outside the (potentially per-time-step) jitted call.
    w_ih_r, w_hh_r, b_r = jax.block_until_ready(prepare_params(w_ih, b_ih, w_hh, b_hh))

    hy, cy = jax.jit(lstm_cell_forward)(x, h0, c0, w_ih_r, w_hh_r, b_r)
    jax.block_until_ready((hy, cy))

    hy_ref, cy_ref = ref_forward(x, h0, c0, w_ih, b_ih, w_hh, b_hh)
    np.testing.assert_allclose(np.asarray(hy), np.asarray(hy_ref), rtol=1e-4, atol=1e-4)
    np.testing.assert_allclose(np.asarray(cy), np.asarray(cy_ref), rtol=1e-4, atol=1e-4)

    print("KERNEL_OK")
</pallas_src>

<mosaic_0001>
module attributes {stable_mosaic.version = 11 : i64} {
  func.func @lstm_stack_kernel(%arg0: memref<8x128xf32, #tpu.memory_space<vmem>>, %arg1: memref<2x8x128xf32, #tpu.memory_space<vmem>>, %arg2: memref<2x8x128xf32, #tpu.memory_space<vmem>>, %arg3: memref<2x128x512xf32, #tpu.memory_space<vmem>>, %arg4: memref<2x128x512xf32, #tpu.memory_space<vmem>>, %arg5: memref<2x1x512xf32, #tpu.memory_space<vmem>>, %arg6: memref<2x8x128xf32, #tpu.memory_space<vmem>>, %arg7: memref<2x8x128xf32, #tpu.memory_space<vmem>>) attributes {dimension_semantics = [], scalar_prefetch = 0 : i64, scratch_operands = 0 : i64, tpu.core_type = #tpu.core_type<tc>} {
    %c0 = arith.constant 0 : index
    %c0_0 = arith.constant 0 : index
    %c0_1 = arith.constant 0 : index
    %0 = vector.load %arg1[%c0, %c0_0, %c0_1] : memref<2x8x128xf32, #tpu.memory_space<vmem>>, vector<1x8x128xf32>
    %1 = vector.shape_cast %0 : vector<1x8x128xf32> to vector<8x128xf32>
    %c0_2 = arith.constant 0 : index
    %c0_3 = arith.constant 0 : index
    %c0_4 = arith.constant 0 : index
    %2 = vector.load %arg4[%c0_2, %c0_3, %c0_4] : memref<2x128x512xf32, #tpu.memory_space<vmem>>, vector<1x128x512xf32>
    %3 = vector.shape_cast %2 : vector<1x128x512xf32> to vector<128x512xf32>
    %cst = arith.constant dense<0.000000e+00> : vector<8x512xf32>
    %4 = tpu.matmul %1, %3, %cst {dimension_numbers = #tpu.dot_dimension_numbers<[1], [0], [0], [1], [0, 0, 1, 1], [], []>} : vector<8x128xf32>, vector<128x512xf32>, vector<8x512xf32> -> vector<8x512xf32>
    %c0_5 = arith.constant 0 : index
    %c0_6 = arith.constant 0 : index
    %c0_7 = arith.constant 0 : index
    %5 = vector.load %arg5[%c0_5, %c0_6, %c0_7] : memref<2x1x512xf32, #tpu.memory_space<vmem>>, vector<1x1x512xf32>
    %6 = vector.shape_cast %5 : vector<1x1x512xf32> to vector<1x512xf32>
    %7 = vector.broadcast %6 : vector<1x512xf32> to vector<8x512xf32>
    %8 = arith.addf %4, %7 : vector<8x512xf32>
    %c1 = arith.constant 1 : index
    %c0_8 = arith.constant 0 : index
    %c0_9 = arith.constant 0 : index
    %9 = vector.load %arg1[%c1, %c0_8, %c0_9] : memref<2x8x128xf32, #tpu.memory_space<vmem>>, vector<1x8x128xf32>
    %10 = vector.shape_cast %9 : vector<1x8x128xf32> to vector<8x128xf32>
    %c1_10 = arith.constant 1 : index
    %c0_11 = arith.constant 0 : index
    %c0_12 = arith.constant 0 : index
    %11 = vector.load %arg4[%c1_10, %c0_11, %c0_12] : memref<2x128x512xf32, #tpu.memory_space<vmem>>, vector<1x128x512xf32>
    %12 = vector.shape_cast %11 : vector<1x128x512xf32> to vector<128x512xf32>
    %cst_13 = arith.constant dense<0.000000e+00> : vector<8x512xf32>
    %13 = tpu.matmul %10, %12, %cst_13 {dimension_numbers = #tpu.dot_dimension_numbers<[1], [0], [0], [1], [0, 0, 1, 1], [], []>} : vector<8x128xf32>, vector<128x512xf32>, vector<8x512xf32> -> vector<8x512xf32>
    %c1_14 = arith.constant 1 : index
    %c0_15 = arith.constant 0 : index
    %c0_16 = arith.constant 0 : index
    %14 = vector.load %arg5[%c1_14, %c0_15, %c0_16] : memref<2x1x512xf32, #tpu.memory_space<vmem>>, vector<1x1x512xf32>
    %15 = vector.shape_cast %14 : vector<1x1x512xf32> to vector<1x512xf32>
    %16 = vector.broadcast %15 : vector<1x512xf32> to vector<8x512xf32>
    %17 = arith.addf %13, %16 : vector<8x512xf32>
    %c0_17 = arith.constant 0 : index
    %c0_18 = arith.constant 0 : index
    %18 = vector.load %arg0[%c0_17, %c0_18] : memref<8x128xf32, #tpu.memory_space<vmem>>, vector<8x128xf32>
    %c0_19 = arith.constant 0 : index
    %c0_20 = arith.constant 0 : index
    %c0_21 = arith.constant 0 : index
    %19 = vector.load %arg3[%c0_19, %c0_20, %c0_21] : memref<2x128x512xf32, #tpu.memory_space<vmem>>, vector<1x128x512xf32>
    %20 = vector.shape_cast %19 : vector<1x128x512xf32> to vector<128x512xf32>
    %cst_22 = arith.constant dense<0.000000e+00> : vector<8x512xf32>
    %21 = tpu.matmul %18, %20, %cst_22 {dimension_numbers = #tpu.dot_dimension_numbers<[1], [0], [0], [1], [0, 0, 1, 1], [], []>} : vector<8x128xf32>, vector<128x512xf32>, vector<8x512xf32> -> vector<8x512xf32>
    %22 = arith.addf %21, %8 : vector<8x512xf32>
    %23 = vector.extract_strided_slice %22 {offsets = [0, 0], sizes = [8, 384], strides = [1, 1]} : vector<8x512xf32> to vector<8x384xf32>
    %24 = arith.negf %23 : vector<8x384xf32>
    %25 = math.exp %24 : vector<8x384xf32>
    %cst_23 = arith.constant 1.000000e+00 : f32
    %26 = vector.broadcast %cst_23 : f32 to vector<8x384xf32>
    %27 = arith.addf %26, %25 : vector<8x384xf32>
    %28 = arith.divf %26, %27 : vector<8x384xf32>
    %29 = vector.extract_strided_slice %28 {offsets = [0, 0], sizes = [8, 128], strides = [1, 1]} : vector<8x384xf32> to vector<8x128xf32>
    %30 = vector.extract_strided_slice %28 {offsets = [0, 128], sizes = [8, 128], strides = [1, 1]} : vector<8x384xf32> to vector<8x128xf32>
    %31 = vector.extract_strided_slice %28 {offsets = [0, 256], sizes = [8, 128], strides = [1, 1]} : vector<8x384xf32> to vector<8x128xf32>
    %32 = vector.extract_strided_slice %22 {offsets = [0, 384], sizes = [8, 128], strides = [1, 1]} : vector<8x512xf32> to vector<8x128xf32>
    %cst_24 = arith.constant 0.000000e+00 : f32
    %33 = vector.broadcast %cst_24 : f32 to vector<8x128xf32>
    %34 = arith.maximumf %32, %33 : vector<8x128xf32>
    %c0_25 = arith.constant 0 : index
    %c0_26 = arith.constant 0 : index
    %c0_27 = arith.constant 0 : index
    %35 = vector.load %arg2[%c0_25, %c0_26, %c0_27] : memref<2x8x128xf32, #tpu.memory_space<vmem>>, vector<1x8x128xf32>
    %36 = vector.shape_cast %35 : vector<1x8x128xf32> to vector<8x128xf32>
    %37 = arith.mulf %30, %36 : vector<8x128xf32>
    %38 = arith.mulf %29, %34 : vector<8x128xf32>
    %39 = arith.addf %37, %38 : vector<8x128xf32>
    %40 = math.tanh %39 : vector<8x128xf32>
    %41 = arith.mulf %31, %40 : vector<8x128xf32>
    %c0_28 = arith.constant 0 : index
    %c0_29 = arith.constant 0 : index
    %c0_30 = arith.constant 0 : index
    %42 = vector.load %arg7[%c0_28, %c0_29, %c0_30] : memref<2x8x128xf32, #tpu.memory_space<vmem>>, vector<1x8x128xf32>
    %43 = vector.shape_cast %42 : vector<1x8x128xf32> to vector<8x128xf32>
    %44 = vector.shape_cast %39 : vector<8x128xf32> to vector<1x8x128xf32>
    tpu.vector_store %arg7[%c0_28, %c0_29, %c0_30], %44 {strides = array<i32>} : memref<2x8x128xf32, #tpu.memory_space<vmem>>, vector<1x8x128xf32>,
    %c0_31 = arith.constant 0 : index
    %c0_32 = arith.constant 0 : index
    %c0_33 = arith.constant 0 : index
    %45 = vector.load %arg6[%c0_31, %c0_32, %c0_33] : memref<2x8x128xf32, #tpu.memory_space<vmem>>, vector<1x8x128xf32>
    %46 = vector.shape_cast %45 : vector<1x8x128xf32> to vector<8x128xf32>
    %47 = vector.shape_cast %41 : vector<8x128xf32> to vector<1x8x128xf32>
    tpu.vector_store %arg6[%c0_31, %c0_32, %c0_33], %47 {strides = array<i32>} : memref<2x8x128xf32, #tpu.memory_space<vmem>>, vector<1x8x128xf32>,
    %c1_34 = arith.constant 1 : index
    %c0_35 = arith.constant 0 : index
    %c0_36 = arith.constant 0 : index
    %48 = vector.load %arg3[%c1_34, %c0_35, %c0_36] : memref<2x128x512xf32, #tpu.memory_space<vmem>>, vector<1x128x512xf32>
    %49 = vector.shape_cast %48 : vector<1x128x512xf32> to vector<128x512xf32>
    %cst_37 = arith.constant dense<0.000000e+00> : vector<8x512xf32>
    %50 = tpu.matmul %41, %49, %cst_37 {dimension_numbers = #tpu.dot_dimension_numbers<[1], [0], [0], [1], [0, 0, 1, 1], [], []>} : vector<8x128xf32>, vector<128x512xf32>, vector<8x512xf32> -> vector<8x512xf32>
    %51 = arith.addf %50, %17 : vector<8x512xf32>
    %52 = vector.extract_strided_slice %51 {offsets = [0, 0], sizes = [8, 384], strides = [1, 1]} : vector<8x512xf32> to vector<8x384xf32>
    %53 = arith.negf %52 : vector<8x384xf32>
    %54 = math.exp %53 : vector<8x384xf32>
    %cst_38 = arith.constant 1.000000e+00 : f32
    %55 = vector.broadcast %cst_38 : f32 to vector<8x384xf32>
    %56 = arith.addf %55, %54 : vector<8x384xf32>
    %57 = arith.divf %55, %56 : vector<8x384xf32>
    %58 = vector.extract_strided_slice %57 {offsets = [0, 0], sizes = [8, 128], strides = [1, 1]} : vector<8x384xf32> to vector<8x128xf32>
    %59 = vector.extract_strided_slice %57 {offsets = [0, 128], sizes = [8, 128], strides = [1, 1]} : vector<8x384xf32> to vector<8x128xf32>
    %60 = vector.extract_strided_slice %57 {offsets = [0, 256], sizes = [8, 128], strides = [1, 1]} : vector<8x384xf32> to vector<8x128xf32>
    %61 = vector.extract_strided_slice %51 {offsets = [0, 384], sizes = [8, 128], strides = [1, 1]} : vector<8x512xf32> to vector<8x128xf32>
    %cst_39 = arith.constant 0.000000e+00 : f32
    %62 = vector.broadcast %cst_39 : f32 to vector<8x128xf32>
    %63 = arith.maximumf %61, %62 : vector<8x128xf32>
    %c1_40 = arith.constant 1 : index
    %c0_41 = arith.constant 0 : index
    %c0_42 = arith.constant 0 : index
    %64 = vector.load %arg2[%c1_40, %c0_41, %c0_42] : memref<2x8x128xf32, #tpu.memory_space<vmem>>, vector<1x8x128xf32>
    %65 = vector.shape_cast %64 : vector<1x8x128xf32> to vector<8x128xf32>
    %66 = arith.mulf %59, %65 : vector<8x128xf32>
    %67 = arith.mulf %58, %63 : vector<8x128xf32>
    %68 = arith.addf %66, %67 : vector<8x128xf32>
    %69 = math.tanh %68 : vector<8x128xf32>
    %70 = arith.mulf %60, %69 : vector<8x128xf32>
    %c1_43 = arith.constant 1 : index
    %c0_44 = arith.constant 0 : index
    %c0_45 = arith.constant 0 : index
    %71 = vector.load %arg7[%c1_43, %c0_44, %c0_45] : memref<2x8x128xf32, #tpu.memory_space<vmem>>, vector<1x8x128xf32>
    %72 = vector.shape_cast %71 : vector<1x8x128xf32> to vector<8x128xf32>
    %73 = vector.shape_cast %68 : vector<8x128xf32> to vector<1x8x128xf32>
    tpu.vector_store %arg7[%c1_43, %c0_44, %c0_45], %73 {strides = array<i32>} : memref<2x8x128xf32, #tpu.memory_space<vmem>>, vector<1x8x128xf32>,
    %c1_46 = arith.constant 1 : index
    %c0_47 = arith.constant 0 : index
    %c0_48 = arith.constant 0 : index
    %74 = vector.load %arg6[%c1_46, %c0_47, %c0_48] : memref<2x8x128xf32, #tpu.memory_space<vmem>>, vector<1x8x128xf32>
    %75 = vector.shape_cast %74 : vector<1x8x128xf32> to vector<8x128xf32>
    %76 = vector.shape_cast %70 : vector<8x128xf32> to vector<1x8x128xf32>
    tpu.vector_store %arg6[%c1_46, %c0_47, %c0_48], %76 {strides = array<i32>} : memref<2x8x128xf32, #tpu.memory_space<vmem>>, vector<1x8x128xf32>,
    return
  }
}

</mosaic_0001>

<llo_original>
// kernel: lstm_cell_forward.1
$region0: #{lstm_cell_forward.1}
  #allocation0 [shape = 'u32[]', space=smem, size = 0x4, offset = 0x4, fixed_abs, tag = 'smem constant byte address 0x4 - core index']
  #allocation1 [shape = 'u32[144,128]{1,0:T(1,128)}', space=vmem, size = 0x12000, scoped, tag = 'internal scratch']
  %s0 = inlined_call_operand.hbm [shape: f32[8,128], index: 0, kind: input, shape index: {}]
  %s1 = inlined_call_operand.hbm [shape: f32[2,8,128], index: 1, kind: input, shape index: {}]
  %s2 = inlined_call_operand.hbm [shape: f32[2,8,128], index: 2, kind: input, shape index: {}]
  %s3 = inlined_call_operand.hbm [shape: f32[2,128,512], index: 3, kind: input, shape index: {}]
  %s4 = inlined_call_operand.hbm [shape: f32[2,128,512], index: 4, kind: input, shape index: {}]
  %s5 = inlined_call_operand.vmem [shape: f32[2,1,512], index: 5, kind: input, shape index: {}]
  %s6 = inlined_call_operand.hbm [shape: f32[2,8,128], index: 6, kind: output, shape index: {0}]
  %s7 = inlined_call_operand.hbm [shape: f32[2,8,128], index: 7, kind: output, shape index: {1}]
  %8 = xla_tuple %s6, %s7
  %s9 = sld [smem:[#allocation0]]
  $region62: #{lstm_cell_forward.1} parent=0
    _
  %s11 = ssub.s32 1, %s9
  %s12 = scalar_select 0, %s11, %s9
  $region1: #{lstm_cell_forward.1} parent=0
    #allocation2 [shape = 'u8[4096]{0}', space=vmem, size = 0x1000, scoped, tag = 'input window, operand 0, single buffered']
    #allocation3 [shape = 's32[1]{0}', space=sflag, size = 0x4, scoped, tag = 'scoped memory for lstm_cell_forward.1']
    #allocation4 [shape = 's32[1]{0}', space=sflag, size = 0x4, scoped, tag = 'scoped memory for lstm_cell_forward.1']
    #allocation5 [shape = 'u8[8192]{0}', space=vmem, size = 0x2000, scoped, tag = 'input window, operand 1, single buffered']
    #allocation6 [shape = 's32[1]{0}', space=sflag, size = 0x4, scoped, tag = 'scoped memory for lstm_cell_forward.1']
    #allocation7 [shape = 'u8[8192]{0}', space=vmem, size = 0x2000, scoped, tag = 'input window, operand 2, single buffered']
    #allocation8 [shape = 'u8[524288]{0}', space=vmem, size = 0x80000, scoped, tag = 'input window, operand 3, single buffered']
    #allocation9 [shape = 's32[1]{0}', space=sflag, size = 0x4, scoped, tag = 'scoped memory for lstm_cell_forward.1']
    #allocation10 [shape = 'u8[524288]{0}', space=vmem, size = 0x80000, scoped, tag = 'input window, operand 4, single buffered']
    #allocation11 [shape = 'u8[8192]{0}', space=vmem, size = 0x2000, scoped, tag = 'output window, operand 0, single buffered']
    #allocation12 [shape = 'u8[8192]{0}', space=vmem, size = 0x2000, scoped, tag = 'output window, operand 1, single buffered']
    #allocation13 [shape = 's32[1]{0}', space=sflag, size = 0x4, scoped, tag = 'scoped memory for lstm_cell_forward.1']
    %13 = vsyncpa [#allocation3], 0
    %14 = vsyncpa [#allocation6], 0
    %15 = vsyncpa [#allocation9], 0
    %16 = vsyncpa [#allocation4], 0
    %17 = vsyncpa [#allocation13], 0
    // Predicated region
    $region2: #{lstm_cell_forward.1} parent=1 // pred_check
      _
    $region3: #{lstm_cell_forward.1} parent=1 // pred_check_branch
      %19 = sbr.rel (0) target = $region5
    $region4: #{lstm_cell_forward.1} parent=1 // pred_region
      %s21 = ssub.s32 128, 128
      %22 = vsyncadd [#allocation3], %s21
      %s24 = sshll.u32 [#allocation2], 4
      %s25 = int_to_ptr.vmem [resolvable:$true] %s24
      %27 = dma.hbm_to_vmem [thread:$0]  %s0, 128, %s25, [#allocation3]
    $region5: #{lstm_cell_forward.1} parent=1 // pred_fallthru
      _
    // Predicated region
    $region6: #{lstm_cell_forward.1} parent=1 // pred_check
      _
    $region7: #{lstm_cell_forward.1} parent=1 // pred_check_branch
      %29 = sbr.rel (0) target = $region9
    $region8: #{lstm_cell_forward.1} parent=1 // pred_region
      %s31 = ssub.s32 256, 256
      %32 = vsyncadd [#allocation6], %s31
      %s33 = sshll.u32 [#allocation5], 4
      %s34 = int_to_ptr.vmem [resolvable:$true] %s33
      %39 = dma.hbm_to_vmem [thread:$0]  %s1, 256, %s34, [#allocation6], 128, 128, 8
    $region9: #{lstm_cell_forward.1} parent=1 // pred_fallthru
      _
    // Predicated region
    $region10: #{lstm_cell_forward.1} parent=1 // pred_check
      _
    $region11: #{lstm_cell_forward.1} parent=1 // pred_check_branch
      %41 = sbr.rel (0) target = $region13
    $region12: #{lstm_cell_forward.1} parent=1 // pred_region
      %s43 = ssub.s32 256, 256
      %44 = vsyncadd [#allocation6], %s43
      %s45 = sshll.u32 [#allocation7], 4
      %s46 = int_to_ptr.vmem [resolvable:$true] %s45
      %51 = dma.hbm_to_vmem [thread:$0]  %s2, 256, %s46, [#allocation6], 128, 128, 8
    $region13: #{lstm_cell_forward.1} parent=1 // pred_fallthru
      _
    // Predicated region
    $region14: #{lstm_cell_forward.1} parent=1 // pred_check
      _
    $region15: #{lstm_cell_forward.1} parent=1 // pred_check_branch
      %53 = sbr.rel (0) target = $region17
    $region16: #{lstm_cell_forward.1} parent=1 // pred_region
      %s55 = ssub.s32 16384, 16384
      %56 = vsyncadd [#allocation9], %s55
      %s57 = sshll.u32 [#allocation8], 4
      %s58 = int_to_ptr.vmem [resolvable:$true] %s57
      %63 = dma.hbm_to_vmem [thread:$0]  %s3, 16384, %s58, [#allocation9], 512, 512, 32
    $region17: #{lstm_cell_forward.1} parent=1 // pred_fallthru
      _
    // Predicated region
    $region18: #{lstm_cell_forward.1} parent=1 // pred_check
      _
    $region19: #{lstm_cell_forward.1} parent=1 // pred_check_branch
      %65 = sbr.rel (0) target = $region21
    $region20: #{lstm_cell_forward.1} parent=1 // pred_region
      %s67 = ssub.s32 16384, 16384
      %68 = vsyncadd [#allocation9], %s67
      %s69 = sshll.u32 [#allocation10], 4
      %s70 = int_to_ptr.vmem [resolvable:$true] %s69
      %75 = dma.hbm_to_vmem [thread:$0]  %s4, 16384, %s70, [#allocation9], 512, 512, 32
    $region21: #{lstm_cell_forward.1} parent=1 // pred_fallthru
      _
    // Predicated region
    $region22: #{lstm_cell_forward.1} parent=1 // pred_check
      _
    $region23: #{lstm_cell_forward.1} parent=1 // pred_check_branch
      %77 = sbr.rel (0) target = $region25
    $region24: #{lstm_cell_forward.1} parent=1 // pred_region
      _
    $region25: #{lstm_cell_forward.1} parent=1 // pred_fallthru
      _
    // Predicated region
    $region26: #{lstm_cell_forward.1} parent=1 // pred_check
      _
    $region27: #{lstm_cell_forward.1} parent=1 // pred_check_branch
      %79 = sbr.rel (0) target = $region29
    $region28: #{lstm_cell_forward.1} parent=1 // pred_region
      %80 = dma.done [#allocation3], 128
    $region29: #{lstm_cell_forward.1} parent=1 // pred_fallthru
      _
    // Predicated region
    $region30: #{lstm_cell_forward.1} parent=1 // pred_check
      _
    $region31: #{lstm_cell_forward.1} parent=1 // pred_check_branch
      %82 = sbr.rel (0) target = $region33
    $region32: #{lstm_cell_forward.1} parent=1 // pred_region
      %83 = dma.done [#allocation6], 256
    $region33: #{lstm_cell_forward.1} parent=1 // pred_fallthru
      _
    // Predicated region
    $region34: #{lstm_cell_forward.1} parent=1 // pred_check
      _
    $region35: #{lstm_cell_forward.1} parent=1 // pred_check_branch
      %85 = sbr.rel (0) target = $region37
    $region36: #{lstm_cell_forward.1} parent=1 // pred_region
      %86 = dma.done [#allocation6], 256
    $region37: #{lstm_cell_forward.1} parent=1 // pred_fallthru
      _
    // Predicated region
    $region38: #{lstm_cell_forward.1} parent=1 // pred_check
      _
    $region39: #{lstm_cell_forward.1} parent=1 // pred_check_branch
      %88 = sbr.rel (0) target = $region41
    $region40: #{lstm_cell_forward.1} parent=1 // pred_region
      %89 = dma.done [#allocation9], 16384
    $region41: #{lstm_cell_forward.1} parent=1 // pred_fallthru
      _
    // Predicated region
    $region42: #{lstm_cell_forward.1} parent=1 // pred_check
      _
    $region43: #{lstm_cell_forward.1} parent=1 // pred_check_branch
      %91 = sbr.rel (0) target = $region45
    $region44: #{lstm_cell_forward.1} parent=1 // pred_region
      %92 = dma.done [#allocation9], 16384
    $region45: #{lstm_cell_forward.1} parent=1 // pred_fallthru
      _
    %v93 = vld [vmem:[#allocation5] sm:$0xff]
    %v94 = vld [vmem:[#allocation10] sm:$0xff]
    %v95 = vld [vmem:[#allocation10 + $0x8] sm:$0xff]
    %v96 = vld [vmem:[#allocation10 + $0x10] sm:$0xff]
    %v97 = vld [vmem:[#allocation10 + $0x18] sm:$0xff]
    %v98 = vld [vmem:[#allocation10 + $0x20] sm:$0xff]
    %v99 = vld [vmem:[#allocation10 + $0x28] sm:$0xff]
    %v100 = vld [vmem:[#allocation10 + $0x30] sm:$0xff]
    %v101 = vld [vmem:[#allocation10 + $0x38] sm:$0xff]
    %v102 = vld [vmem:[#allocation10 + $0x40] sm:$0xff]
    %v103 = vld [vmem:[#allocation10 + $0x48] sm:$0xff]
    %v104 = vld [vmem:[#allocation10 + $0x50] sm:$0xff]
    %v105 = vld [vmem:[#allocation10 + $0x58] sm:$0xff]
    %v106 = vld [vmem:[#allocation10 + $0x60] sm:$0xff]
    %v107 = vld [vmem:[#allocation10 + $0x68] sm:$0xff]
    %v108 = vld [vmem:[#allocation10 + $0x70] sm:$0xff]
    %v109 = vld [vmem:[#allocation10 + $0x78] sm:$0xff]
    %v110 = vld [vmem:[#allocation10 + $0x80] sm:$0xff]
    %v111 = vld [vmem:[#allocation10 + $0x88] sm:$0xff]
    %v112 = vld [vmem:[#allocation10 + $0x90] sm:$0xff]
    %v113 = vld [vmem:[#allocation10 + $0x98] sm:$0xff]
    %v114 = vld [vmem:[#allocation10 + $0xa0] sm:$0xff]
    %v115 = vld [vmem:[#allocation10 + $0xa8] sm:$0xff]
    %v116 = vld [vmem:[#allocation10 + $0xb0] sm:$0xff]
    %v117 = vld [vmem:[#allocation10 + $0xb8] sm:$0xff]
    %v118 = vld [vmem:[#allocation10 + $0xc0] sm:$0xff]
    %v119 = vld [vmem:[#allocation10 + $0xc8] sm:$0xff]
    %v120 = vld [vmem:[#allocation10 + $0xd0] sm:$0xff]
    %v121 = vld [vmem:[#allocation10 + $0xd8] sm:$0xff]
    %v122 = vld [vmem:[#allocation10 + $0xe0] sm:$0xff]
    %v123 = vld [vmem:[#allocation10 + $0xe8] sm:$0xff]
    %v124 = vld [vmem:[#allocation10 + $0xf0] sm:$0xff]
    %v125 = vld [vmem:[#allocation10 + $0xf8] sm:$0xff]
    %v126 = vld [vmem:[#allocation10 + $0x100] sm:$0xff]
    %v127 = vld [vmem:[#allocation10 + $0x108] sm:$0xff]
    %v128 = vld [vmem:[#allocation10 + $0x110] sm:$0xff]
    %v129 = vld [vmem:[#allocation10 + $0x118] sm:$0xff]
    %v130 = vld [vmem:[#allocation10 + $0x120] sm:$0xff]
    %v131 = vld [vmem:[#allocation10 + $0x128] sm:$0xff]
    %v132 = vld [vmem:[#allocation10 + $0x130] sm:$0xff]
    %v133 = vld [vmem:[#allocation10 + $0x138] sm:$0xff]
    %v134 = vld [vmem:[#allocation10 + $0x140] sm:$0xff]
    %v135 = vld [vmem:[#allocation10 + $0x148] sm:$0xff]
    %v136 = vld [vmem:[#allocation10 + $0x150] sm:$0xff]
    %v137 = vld [vmem:[#allocation10 + $0x158] sm:$0xff]
    %v138 = vld [vmem:[#allocation10 + $0x160] sm:$0xff]
    %v139 = vld [vmem:[#allocation10 + $0x168] sm:$0xff]
    %v140 = vld [vmem:[#allocation10 + $0x170] sm:$0xff]
    %v141 = vld [vmem:[#allocation10 + $0x178] sm:$0xff]
    %v142 = vld [vmem:[#allocation10 + $0x180] sm:$0xff]
    %v143 = vld [vmem:[#allocation10 + $0x188] sm:$0xff]
    %v144 = vld [vmem:[#allocation10 + $0x190] sm:$0xff]
    %v145 = vld [vmem:[#allocation10 + $0x198] sm:$0xff]
    %v146 = vld [vmem:[#allocation10 + $0x1a0] sm:$0xff]
    %v147 = vld [vmem:[#allocation10 + $0x1a8] sm:$0xff]
    %v148 = vld [vmem:[#allocation10 + $0x1b0] sm:$0xff]
    %v149 = vld [vmem:[#allocation10 + $0x1b8] sm:$0xff]
    %v150 = vld [vmem:[#allocation10 + $0x1c0] sm:$0xff]
    %v151 = vld [vmem:[#allocation10 + $0x1c8] sm:$0xff]
    %v152 = vld [vmem:[#allocation10 + $0x1d0] sm:$0xff]
    %v153 = vld [vmem:[#allocation10 + $0x1d8] sm:$0xff]
    %v154 = vld [vmem:[#allocation10 + $0x1e0] sm:$0xff]
    %v155 = vld [vmem:[#allocation10 + $0x1e8] sm:$0xff]
    %v156 = vld [vmem:[#allocation10 + $0x1f0] sm:$0xff]
    %v157 = vld [vmem:[#allocation10 + $0x1f8] sm:$0xff]
    %v158 = vld [vmem:[%s5] sm:$0xf]
    %v160 = vlaneseq
    %v161 = vshrl.u32 %v160, 7
    %v162 = vsub.s32 0, %v161
    %v163 = vrot.slane %v158, %v162
    %v164 = vlaneseq
    %v165 = vshrl.u32 %v164, 7
    %v166 = vsub.s32 1, %v165
    %v167 = vrot.slane %v158, %v166
    %v168 = vlaneseq
    %v169 = vshrl.u32 %v168, 7
    %v170 = vsub.s32 2, %v169
    %v171 = vrot.slane %v158, %v170
    %v172 = vlaneseq
    %v173 = vshrl.u32 %v172, 7
    %v174 = vsub.s32 3, %v173
    %v175 = vrot.slane %v158, %v174
    %180 = vmatprep.subr.mxu0 %v155
    %181 = vmatpush1.msra.mxu0 %v154
    %182 = vmatprep.subr.mxu0 %v151
    %183 = vmatpush1.msra.mxu0 %v150
    %184 = vmatprep.subr.mxu0 %v147
    %185 = vmatpush1.msra.mxu0 %v146
    %186 = vmatprep.subr.mxu0 %v143
    %187 = vmatpush1.msra.mxu0 %v142
    %188 = vmatprep.subr.mxu0 %v139
    %189 = vmatpush1.msra.mxu0 %v138
    %190 = vmatprep.subr.mxu0 %v135
    %191 = vmatpush1.msra.mxu0 %v134
    %192 = vmatprep.subr.mxu0 %v131
    %193 = vmatpush1.msra.mxu0 %v130
    %194 = vmatprep.subr.mxu0 %v127
    %195 = vmatpush1.msra.mxu0 %v126
    %196 = vmatprep.subr.mxu0 %v123
    %197 = vmatpush1.msra.mxu0 %v122
    %198 = vmatprep.subr.mxu0 %v119
    %199 = vmatpush1.msra.mxu0 %v118
    %200 = vmatprep.subr.mxu0 %v115
    %201 = vmatpush1.msra.mxu0 %v114
    %202 = vmatprep.subr.mxu0 %v111
    %203 = vmatpush1.msra.mxu0 %v110
    %204 = vmatprep.subr.mxu0 %v107
    %205 = vmatpush1.msra.mxu0 %v106
    %206 = vmatprep.subr.mxu0 %v103
    %207 = vmatpush1.msra.mxu0 %v102
    %208 = vmatprep.subr.mxu0 %v99
    %209 = vmatpush1.msra.mxu0 %v98
    %210 = vmatprep.subr.mxu0 %v95
    %211 = vmatpush1.msra.mxu0 %v94
    %212 = vmatprep.subr.mxu0 0.0
    %213 = vmatpush2.msra.mxu0 0.0
    %214 = vmatprep.subr.mxu0 0.0
    %215 = vmatpush2.msra.mxu0 0.0
    %216 = vmatprep.subr.mxu0 0.0
    %217 = vmatpush2.msra.mxu0 0.0
    %218 = vmatprep.subr.mxu0 0.0
    %219 = vmatpush2.msra.mxu0 0.0
    %220 = vmatprep.subr.mxu0 0.0
    %221 = vmatpush2.msra.mxu0 0.0
    %222 = vmatprep.subr.mxu0 0.0
    %223 = vmatpush2.msra.mxu0 0.0
    %224 = vmatprep.subr.mxu0 0.0
    %225 = vmatpush2.msra.mxu0 0.0
    %226 = vmatprep.subr.mxu0 0.0
    %227 = vmatpush2.msra.mxu0 0.0
    %228 = vmatprep.subr.mxu0 0.0
    %229 = vmatpush2.msra.mxu0 0.0
    %230 = vmatprep.subr.mxu0 0.0
    %231 = vmatpush2.msra.mxu0 0.0
    %232 = vmatprep.subr.mxu0 0.0
    %233 = vmatpush2.msra.mxu0 0.0
    %234 = vmatprep.subr.mxu0 0.0
    %235 = vmatpush2.msra.mxu0 0.0
    %236 = vmatprep.subr.mxu0 0.0
    %237 = vmatpush2.msra.mxu0 0.0
    %238 = vmatprep.subr.mxu0 0.0
    %239 = vmatpush2.msra.mxu0 0.0
    %240 = vmatprep.subr.mxu0 0.0
    %241 = vmatpush2.msra.mxu0 0.0
    %242 = vmatprep.subr.mxu0 0.0
    %243 = vmatpush2.msra.mxu0 0.0
    %244 = vmatprep.mubr.f32.mxu0 0.0
    %245 = vmatmul.mubr.f32.gmra.mxu0 %v93
    %v246 = vpop.f32.mrf.mxu0
    %v247 = vadd.f32 %v163, %v246
    %v248 = vpop.f32.mrf.mxu0
    %v249 = vadd.f32 %v167, %v248
    %250 = vdwg.mxu0
    %251 = vmatprep.subr.mxu0 %v157
    %252 = vmatpush1.msra.mxu0 %v156
    %253 = vmatprep.subr.mxu0 %v153
    %254 = vmatpush1.msra.mxu0 %v152
    %255 = vmatprep.subr.mxu0 %v149
    %256 = vmatpush1.msra.mxu0 %v148
    %257 = vmatprep.subr.mxu0 %v145
    %258 = vmatpush1.msra.mxu0 %v144
    %259 = vmatprep.subr.mxu0 %v141
    %260 = vmatpush1.msra.mxu0 %v140
    %261 = vmatprep.subr.mxu0 %v137
    %262 = vmatpush1.msra.mxu0 %v136
    %263 = vmatprep.subr.mxu0 %v133
    %264 = vmatpush1.msra.mxu0 %v132
    %265 = vmatprep.subr.mxu0 %v129
    %266 = vmatpush1.msra.mxu0 %v128
    %267 = vmatprep.subr.mxu0 %v125
    %268 = vmatpush1.msra.mxu0 %v124
    %269 = vmatprep.subr.mxu0 %v121
    %270 = vmatpush1.msra.mxu0 %v120
    %271 = vmatprep.subr.mxu0 %v117
    %272 = vmatpush1.msra.mxu0 %v116
    %273 = vmatprep.subr.mxu0 %v113
    %274 = vmatpush1.msra.mxu0 %v112
    %275 = vmatprep.subr.mxu0 %v109
    %276 = vmatpush1.msra.mxu0 %v108
    %277 = vmatprep.subr.mxu0 %v105
    %278 = vmatpush1.msra.mxu0 %v104
    %279 = vmatprep.subr.mxu0 %v101
    %280 = vmatpush1.msra.mxu0 %v100
    %281 = vmatprep.subr.mxu0 %v97
    %282 = vmatpush1.msra.mxu0 %v96
    %283 = vmatprep.subr.mxu0 0.0
    %284 = vmatpush2.msra.mxu0 0.0
    %285 = vmatprep.subr.mxu0 0.0
    %286 = vmatpush2.msra.mxu0 0.0
    %287 = vmatprep.subr.mxu0 0.0
    %288 = vmatpush2.msra.mxu0 0.0
    %289 = vmatprep.subr.mxu0 0.0
    %290 = vmatpush2.msra.mxu0 0.0
    %291 = vmatprep.subr.mxu0 0.0
    %292 = vmatpush2.msra.mxu0 0.0
    %293 = vmatprep.subr.mxu0 0.0
    %294 = vmatpush2.msra.mxu0 0.0
    %295 = vmatprep.subr.mxu0 0.0
    %296 = vmatpush2.msra.mxu0 0.0
    %297 = vmatprep.subr.mxu0 0.0
    %298 = vmatpush2.msra.mxu0 0.0
    %299 = vmatprep.subr.mxu0 0.0
    %300 = vmatpush2.msra.mxu0 0.0
    %301 = vmatprep.subr.mxu0 0.0
    %302 = vmatpush2.msra.mxu0 0.0
    %303 = vmatprep.subr.mxu0 0.0
    %304 = vmatpush2.msra.mxu0 0.0
    %305 = vmatprep.subr.mxu0 0.0
    %306 = vmatpush2.msra.mxu0 0.0
    %307 = vmatprep.subr.mxu0 0.0
    %308 = vmatpush2.msra.mxu0 0.0
    %309 = vmatprep.subr.mxu0 0.0
    %310 = vmatpush2.msra.mxu0 0.0
    %311 = vmatprep.subr.mxu0 0.0
    %312 = vmatpush2.msra.mxu0 0.0
    %313 = vmatprep.subr.mxu0 0.0
    %314 = vmatpush2.msra.mxu0 0.0
    %315 = vmatprep.mubr.f32.mxu0 0.0
    %316 = vmatmul.mubr.f32.gmra.mxu0 %v93
    %v317 = vpop.f32.mrf.mxu0
    %v318 = vadd.f32 %v171, %v317
    %v319 = vpop.f32.mrf.mxu0
    %v320 = vadd.f32 %v175, %v319
    %321 = vdwg.mxu0
    %s322 = scalar_lea.vmem [#allocation5], 8
    %v323 = vld [vmem:[%s322] sm:$0xff]
    %s324 = scalar_lea.vmem [#allocation10], 512
    %v325 = vld [vmem:[%s324] sm:$0xff]
    %v326 = vld [vmem:[%s324 + $0x8] sm:$0xff]
    %v327 = vld [vmem:[%s324 + $0x10] sm:$0xff]
    %v328 = vld [vmem:[%s324 + $0x18] sm:$0xff]
    %v329 = vld [vmem:[%s324 + $0x20] sm:$0xff]
    %v330 = vld [vmem:[%s324 + $0x28] sm:$0xff]
    %v331 = vld [vmem:[%s324 + $0x30] sm:$0xff]
    %v332 = vld [vmem:[%s324 + $0x38] sm:$0xff]
    %v333 = vld [vmem:[%s324 + $0x40] sm:$0xff]
    %v334 = vld [vmem:[%s324 + $0x48] sm:$0xff]
    %v335 = vld [vmem:[%s324 + $0x50] sm:$0xff]
    %v336 = vld [vmem:[%s324 + $0x58] sm:$0xff]
    %v337 = vld [vmem:[%s324 + $0x60] sm:$0xff]
    %v338 = vld [vmem:[%s324 + $0x68] sm:$0xff]
    %v339 = vld [vmem:[%s324 + $0x70] sm:$0xff]
    %v340 = vld [vmem:[%s324 + $0x78] sm:$0xff]
    %v341 = vld [vmem:[%s324 + $0x80] sm:$0xff]
    %v342 = vld [vmem:[%s324 + $0x88] sm:$0xff]
    %v343 = vld [vmem:[%s324 + $0x90] sm:$0xff]
    %v344 = vld [vmem:[%s324 + $0x98] sm:$0xff]
    %v345 = vld [vmem:[%s324 + $0xa0] sm:$0xff]
    %v346 = vld [vmem:[%s324 + $0xa8] sm:$0xff]
    %v347 = vld [vmem:[%s324 + $0xb0] sm:$0xff]
    %v348 = vld [vmem:[%s324 + $0xb8] sm:$0xff]
    %v349 = vld [vmem:[%s324 + $0xc0] sm:$0xff]
    %v350 = vld [vmem:[%s324 + $0xc8] sm:$0xff]
    %v351 = vld [vmem:[%s324 + $0xd0] sm:$0xff]
    %v352 = vld [vmem:[%s324 + $0xd8] sm:$0xff]
    %v353 = vld [vmem:[%s324 + $0xe0] sm:$0xff]
    %v354 = vld [vmem:[%s324 + $0xe8] sm:$0xff]
    %v355 = vld [vmem:[%s324 + $0xf0] sm:$0xff]
    %v356 = vld [vmem:[%s324 + $0xf8] sm:$0xff]
    %v357 = vld [vmem:[%s324 + $0x100] sm:$0xff]
    %v358 = vld [vmem:[%s324 + $0x108] sm:$0xff]
    %v359 = vld [vmem:[%s324 + $0x110] sm:$0xff]
    %v360 = vld [vmem:[%s324 + $0x118] sm:$0xff]
    %v361 = vld [vmem:[%s324 + $0x120] sm:$0xff]
    %v362 = vld [vmem:[%s324 + $0x128] sm:$0xff]
    %v363 = vld [vmem:[%s324 + $0x130] sm:$0xff]
    %v364 = vld [vmem:[%s324 + $0x138] sm:$0xff]
    %v365 = vld [vmem:[%s324 + $0x140] sm:$0xff]
    %v366 = vld [vmem:[%s324 + $0x148] sm:$0xff]
    %v367 = vld [vmem:[%s324 + $0x150] sm:$0xff]
    %v368 = vld [vmem:[%s324 + $0x158] sm:$0xff]
    %v369 = vld [vmem:[%s324 + $0x160] sm:$0xff]
    %v370 = vld [vmem:[%s324 + $0x168] sm:$0xff]
    %v371 = vld [vmem:[%s324 + $0x170] sm:$0xff]
    %v372 = vld [vmem:[%s324 + $0x178] sm:$0xff]
    %v373 = vld [vmem:[%s324 + $0x180] sm:$0xff]
    %v374 = vld [vmem:[%s324 + $0x188] sm:$0xff]
    %v375 = vld [vmem:[%s324 + $0x190] sm:$0xff]
    %v376 = vld [vmem:[%s324 + $0x198] sm:$0xff]
    %v377 = vld [vmem:[%s324 + $0x1a0] sm:$0xff]
    %v378 = vld [vmem:[%s324 + $0x1a8] sm:$0xff]
    %v379 = vld [vmem:[%s324 + $0x1b0] sm:$0xff]
    %v380 = vld [vmem:[%s324 + $0x1b8] sm:$0xff]
    %v381 = vld [vmem:[%s324 + $0x1c0] sm:$0xff]
    %v382 = vld [vmem:[%s324 + $0x1c8] sm:$0xff]
    %v383 = vld [vmem:[%s324 + $0x1d0] sm:$0xff]
    %v384 = vld [vmem:[%s324 + $0x1d8] sm:$0xff]
    %v385 = vld [vmem:[%s324 + $0x1e0] sm:$0xff]
    %v386 = vld [vmem:[%s324 + $0x1e8] sm:$0xff]
    %v387 = vld [vmem:[%s324 + $0x1f0] sm:$0xff]
    %v388 = vld [vmem:[%s324 + $0x1f8] sm:$0xff]
    %s389 = scalar_lea.vmem %s5, 4
    %v390 = vld [vmem:[%s389] sm:$0xf]
    %v392 = vlaneseq
    %v393 = vshrl.u32 %v392, 7
    %v394 = vsub.s32 0, %v393
    %v395 = vrot.slane %v390, %v394
    %v396 = vlaneseq
    %v397 = vshrl.u32 %v396, 7
    %v398 = vsub.s32 1, %v397
    %v399 = vrot.slane %v390, %v398
    %v400 = vlaneseq
    %v401 = vshrl.u32 %v400, 7
    %v402 = vsub.s32 2, %v401
    %v403 = vrot.slane %v390, %v402
    %v404 = vlaneseq
    %v405 = vshrl.u32 %v404, 7
    %v406 = vsub.s32 3, %v405
    %v407 = vrot.slane %v390, %v406
    %412 = vmatprep.subr.mxu0 %v386
    %413 = vmatpush1.msra.mxu0 %v385
    %414 = vmatprep.subr.mxu0 %v382
    %415 = vmatpush1.msra.mxu0 %v381
    %416 = vmatprep.subr.mxu0 %v378
    %417 = vmatpush1.msra.mxu0 %v377
    %418 = vmatprep.subr.mxu0 %v374
    %419 = vmatpush1.msra.mxu0 %v373
    %420 = vmatprep.subr.mxu0 %v370
    %421 = vmatpush1.msra.mxu0 %v369
    %422 = vmatprep.subr.mxu0 %v366
    %423 = vmatpush1.msra.mxu0 %v365
    %424 = vmatprep.subr.mxu0 %v362
    %425 = vmatpush1.msra.mxu0 %v361
    %426 = vmatprep.subr.mxu0 %v358
    %427 = vmatpush1.msra.mxu0 %v357
    %428 = vmatprep.subr.mxu0 %v354
    %429 = vmatpush1.msra.mxu0 %v353
    %430 = vmatprep.subr.mxu0 %v350
    %431 = vmatpush1.msra.mxu0 %v349
    %432 = vmatprep.subr.mxu0 %v346
    %433 = vmatpush1.msra.mxu0 %v345
    %434 = vmatprep.subr.mxu0 %v342
    %435 = vmatpush1.msra.mxu0 %v341
    %436 = vmatprep.subr.mxu0 %v338
    %437 = vmatpush1.msra.mxu0 %v337
    %438 = vmatprep.subr.mxu0 %v334
    %439 = vmatpush1.msra.mxu0 %v333
    %440 = vmatprep.subr.mxu0 %v330
    %441 = vmatpush1.msra.mxu0 %v329
    %442 = vmatprep.subr.mxu0 %v326
    %443 = vmatpush1.msra.mxu0 %v325
    %444 = vmatprep.subr.mxu0 0.0
    %445 = vmatpush2.msra.mxu0 0.0
    %446 = vmatprep.subr.mxu0 0.0
    %447 = vmatpush2.msra.mxu0 0.0
    %448 = vmatprep.subr.mxu0 0.0
    %449 = vmatpush2.msra.mxu0 0.0
    %450 = vmatprep.subr.mxu0 0.0
    %451 = vmatpush2.msra.mxu0 0.0
    %452 = vmatprep.subr.mxu0 0.0
    %453 = vmatpush2.msra.mxu0 0.0
    %454 = vmatprep.subr.mxu0 0.0
    %455 = vmatpush2.msra.mxu0 0.0
    %456 = vmatprep.subr.mxu0 0.0
    %457 = vmatpush2.msra.mxu0 0.0
    %458 = vmatprep.subr.mxu0 0.0
    %459 = vmatpush2.msra.mxu0 0.0
    %460 = vmatprep.subr.mxu0 0.0
    %461 = vmatpush2.msra.mxu0 0.0
    %462 = vmatprep.subr.mxu0 0.0
    %463 = vmatpush2.msra.mxu0 0.0
    %464 = vmatprep.subr.mxu0 0.0
    %465 = vmatpush2.msra.mxu0 0.0
    %466 = vmatprep.subr.mxu0 0.0
    %467 = vmatpush2.msra.mxu0 0.0
    %468 = vmatprep.subr.mxu0 0.0
    %469 = vmatpush2.msra.mxu0 0.0
    %470 = vmatprep.subr.mxu0 0.0
    %471 = vmatpush2.msra.mxu0 0.0
    %472 = vmatprep.subr.mxu0 0.0
    %473 = vmatpush2.msra.mxu0 0.0
    %474 = vmatprep.subr.mxu0 0.0
    %475 = vmatpush2.msra.mxu0 0.0
    %476 = vmatprep.mubr.f32.mxu0 0.0
    %477 = vmatmul.mubr.f32.gmra.mxu0 %v323
    %v478 = vpop.f32.mrf.mxu0
    %v479 = vadd.f32 %v395, %v478
    %v480 = vpop.f32.mrf.mxu0
    %v481 = vadd.f32 %v399, %v480
    %482 = vdwg.mxu0
    %483 = vmatprep.subr.mxu0 %v388
    %484 = vmatpush1.msra.mxu0 %v387
    %485 = vmatprep.subr.mxu0 %v384
    %486 = vmatpush1.msra.mxu0 %v383
    %487 = vmatprep.subr.mxu0 %v380
    %488 = vmatpush1.msra.mxu0 %v379
    %489 = vmatprep.subr.mxu0 %v376
    %490 = vmatpush1.msra.mxu0 %v375
    %491 = vmatprep.subr.mxu0 %v372
    %492 = vmatpush1.msra.mxu0 %v371
    %493 = vmatprep.subr.mxu0 %v368
    %494 = vmatpush1.msra.mxu0 %v367
    %495 = vmatprep.subr.mxu0 %v364
    %496 = vmatpush1.msra.mxu0 %v363
    %497 = vmatprep.subr.mxu0 %v360
    %498 = vmatpush1.msra.mxu0 %v359
    %499 = vmatprep.subr.mxu0 %v356
    %500 = vmatpush1.msra.mxu0 %v355
    %501 = vmatprep.subr.mxu0 %v352
    %502 = vmatpush1.msra.mxu0 %v351
    %503 = vmatprep.subr.mxu0 %v348
    %504 = vmatpush1.msra.mxu0 %v347
    %505 = vmatprep.subr.mxu0 %v344
    %506 = vmatpush1.msra.mxu0 %v343
    %507 = vmatprep.subr.mxu0 %v340
    %508 = vmatpush1.msra.mxu0 %v339
    %509 = vmatprep.subr.mxu0 %v336
    %510 = vmatpush1.msra.mxu0 %v335
    %511 = vmatprep.subr.mxu0 %v332
    %512 = vmatpush1.msra.mxu0 %v331
    %513 = vmatprep.subr.mxu0 %v328
    %514 = vmatpush1.msra.mxu0 %v327
    %515 = vmatprep.subr.mxu0 0.0
    %516 = vmatpush2.msra.mxu0 0.0
    %517 = vmatprep.subr.mxu0 0.0
    %518 = vmatpush2.msra.mxu0 0.0
    %519 = vmatprep.subr.mxu0 0.0
    %520 = vmatpush2.msra.mxu0 0.0
    %521 = vmatprep.subr.mxu0 0.0
    %522 = vmatpush2.msra.mxu0 0.0
    %523 = vmatprep.subr.mxu0 0.0
    %524 = vmatpush2.msra.mxu0 0.0
    %525 = vmatprep.subr.mxu0 0.0
    %526 = vmatpush2.msra.mxu0 0.0
    %527 = vmatprep.subr.mxu0 0.0
    %528 = vmatpush2.msra.mxu0 0.0
    %529 = vmatprep.subr.mxu0 0.0
    %530 = vmatpush2.msra.mxu0 0.0
    %531 = vmatprep.subr.mxu0 0.0
    %532 = vmatpush2.msra.mxu0 0.0
    %533 = vmatprep.subr.mxu0 0.0
    %534 = vmatpush2.msra.mxu0 0.0
    %535 = vmatprep.subr.mxu0 0.0
    %536 = vmatpush2.msra.mxu0 0.0
    %537 = vmatprep.subr.mxu0 0.0
    %538 = vmatpush2.msra.mxu0 0.0
    %539 = vmatprep.subr.mxu0 0.0
    %540 = vmatpush2.msra.mxu0 0.0
    %541 = vmatprep.subr.mxu0 0.0
    %542 = vmatpush2.msra.mxu0 0.0
    %543 = vmatprep.subr.mxu0 0.0
    %544 = vmatpush2.msra.mxu0 0.0
    %545 = vmatprep.subr.mxu0 0.0
    %546 = vmatpush2.msra.mxu0 0.0
    %547 = vmatprep.mubr.f32.mxu0 0.0
    %548 = vmatmul.mubr.f32.gmra.mxu0 %v323
    %v549 = vpop.f32.mrf.mxu0
    %v550 = vadd.f32 %v403, %v549
    %v551 = vpop.f32.mrf.mxu0
    %v552 = vadd.f32 %v407, %v551
    %553 = vdwg.mxu0
    %v554 = vld [vmem:[#allocation2] sm:$0xff]
    %v555 = vld [vmem:[#allocation8] sm:$0xff]
    %v556 = vld [vmem:[#allocation8 + $0x8] sm:$0xff]
    %v557 = vld [vmem:[#allocation8 + $0x10] sm:$0xff]
    %v558 = vld [vmem:[#allocation8 + $0x18] sm:$0xff]
    %v559 = vld [vmem:[#allocation8 + $0x20] sm:$0xff]
    %v560 = vld [vmem:[#allocation8 + $0x28] sm:$0xff]
    %v561 = vld [vmem:[#allocation8 + $0x30] sm:$0xff]
    %v562 = vld [vmem:[#allocation8 + $0x38] sm:$0xff]
    %v563 = vld [vmem:[#allocation8 + $0x40] sm:$0xff]
    %v564 = vld [vmem:[#allocation8 + $0x48] sm:$0xff]
    %v565 = vld [vmem:[#allocation8 + $0x50] sm:$0xff]
    %v566 = vld [vmem:[#allocation8 + $0x58] sm:$0xff]
    %v567 = vld [vmem:[#allocation8 + $0x60] sm:$0xff]
    %v568 = vld [vmem:[#allocation8 + $0x68] sm:$0xff]
    %v569 = vld [vmem:[#allocation8 + $0x70] sm:$0xff]
    %v570 = vld [vmem:[#allocation8 + $0x78] sm:$0xff]
    %v571 = vld [vmem:[#allocation8 + $0x80] sm:$0xff]
    %v572 = vld [vmem:[#allocation8 + $0x88] sm:$0xff]
    %v573 = vld [vmem:[#allocation8 + $0x90] sm:$0xff]
    %v574 = vld [vmem:[#allocation8 + $0x98] sm:$0xff]
    %v575 = vld [vmem:[#allocation8 + $0xa0] sm:$0xff]
    %v576 = vld [vmem:[#allocation8 + $0xa8] sm:$0xff]
    %v577 = vld [vmem:[#allocation8 + $0xb0] sm:$0xff]
    %v578 = vld [vmem:[#allocation8 + $0xb8] sm:$0xff]
    %v579 = vld [vmem:[#allocation8 + $0xc0] sm:$0xff]
    %v580 = vld [vmem:[#allocation8 + $0xc8] sm:$0xff]
    %v581 = vld [vmem:[#allocation8 + $0xd0] sm:$0xff]
    %v582 = vld [vmem:[#allocation8 + $0xd8] sm:$0xff]
    %v583 = vld [vmem:[#allocation8 + $0xe0] sm:$0xff]
    %v584 = vld [vmem:[#allocation8 + $0xe8] sm:$0xff]
    %v585 = vld [vmem:[#allocation8 + $0xf0] sm:$0xff]
    %v586 = vld [vmem:[#allocation8 + $0xf8] sm:$0xff]
    %v587 = vld [vmem:[#allocation8 + $0x100] sm:$0xff]
    %v588 = vld [vmem:[#allocation8 + $0x108] sm:$0xff]
    %v589 = vld [vmem:[#allocation8 + $0x110] sm:$0xff]
    %v590 = vld [vmem:[#allocation8 + $0x118] sm:$0xff]
    %v591 = vld [vmem:[#allocation8 + $0x120] sm:$0xff]
    %v592 = vld [vmem:[#allocation8 + $0x128] sm:$0xff]
    %v593 = vld [vmem:[#allocation8 + $0x130] sm:$0xff]
    %v594 = vld [vmem:[#allocation8 + $0x138] sm:$0xff]
    %v595 = vld [vmem:[#allocation8 + $0x140] sm:$0xff]
    %v596 = vld [vmem:[#allocation8 + $0x148] sm:$0xff]
    %v597 = vld [vmem:[#allocation8 + $0x150] sm:$0xff]
    %v598 = vld [vmem:[#allocation8 + $0x158] sm:$0xff]
    %v599 = vld [vmem:[#allocation8 + $0x160] sm:$0xff]
    %v600 = vld [vmem:[#allocation8 + $0x168] sm:$0xff]
    %v601 = vld [vmem:[#allocation8 + $0x170] sm:$0xff]
    %v602 = vld [vmem:[#allocation8 + $0x178] sm:$0xff]
    %v603 = vld [vmem:[#allocation8 + $0x180] sm:$0xff]
    %v604 = vld [vmem:[#allocation8 + $0x188] sm:$0xff]
    %v605 = vld [vmem:[#allocation8 + $0x190] sm:$0xff]
    %v606 = vld [vmem:[#allocation8 + $0x198] sm:$0xff]
    %v607 = vld [vmem:[#allocation8 + $0x1a0] sm:$0xff]
    %v608 = vld [vmem:[#allocation8 + $0x1a8] sm:$0xff]
    %v609 = vld [vmem:[#allocation8 + $0x1b0] sm:$0xff]
    %v610 = vld [vmem:[#allocation8 + $0x1b8] sm:$0xff]
    %v611 = vld [vmem:[#allocation8 + $0x1c0] sm:$0xff]
    %v612 = vld [vmem:[#allocation8 + $0x1c8] sm:$0xff]
    %v613 = vld [vmem:[#allocation8 + $0x1d0] sm:$0xff]
    %v614 = vld [vmem:[#allocation8 + $0x1d8] sm:$0xff]
    %v615 = vld [vmem:[#allocation8 + $0x1e0] sm:$0xff]
    %v616 = vld [vmem:[#allocation8 + $0x1e8] sm:$0xff]
    %v617 = vld [vmem:[#allocation8 + $0x1f0] sm:$0xff]
    %v618 = vld [vmem:[#allocation8 + $0x1f8] sm:$0xff]
    %619 = vmatprep.subr.mxu0 %v616
    %620 = vmatpush1.msra.mxu0 %v615
    %621 = vmatprep.subr.mxu0 %v612
    %622 = vmatpush1.msra.mxu0 %v611
    %623 = vmatprep.subr.mxu0 %v608
    %624 = vmatpush1.msra.mxu0 %v607
    %625 = vmatprep.subr.mxu0 %v604
    %626 = vmatpush1.msra.mxu0 %v603
    %627 = vmatprep.subr.mxu0 %v600
    %628 = vmatpush1.msra.mxu0 %v599
    %629 = vmatprep.subr.mxu0 %v596
    %630 = vmatpush1.msra.mxu0 %v595
    %631 = vmatprep.subr.mxu0 %v592
    %632 = vmatpush1.msra.mxu0 %v591
    %633 = vmatprep.subr.mxu0 %v588
    %634 = vmatpush1.msra.mxu0 %v587
    %635 = vmatprep.subr.mxu0 %v584
    %636 = vmatpush1.msra.mxu0 %v583
    %637 = vmatprep.subr.mxu0 %v580
    %638 = vmatpush1.msra.mxu0 %v579
    %639 = vmatprep.subr.mxu0 %v576
    %640 = vmatpush1.msra.mxu0 %v575
    %641 = vmatprep.subr.mxu0 %v572
    %642 = vmatpush1.msra.mxu0 %v571
    %643 = vmatprep.subr.mxu0 %v568
    %644 = vmatpush1.msra.mxu0 %v567
    %645 = vmatprep.subr.mxu0 %v564
    %646 = vmatpush1.msra.mxu0 %v563
    %647 = vmatprep.subr.mxu0 %v560
    %648 = vmatpush1.msra.mxu0 %v559
    %649 = vmatprep.subr.mxu0 %v556
    %650 = vmatpush1.msra.mxu0 %v555
    %651 = vmatprep.subr.mxu0 0.0
    %652 = vmatpush2.msra.mxu0 0.0
    %653 = vmatprep.subr.mxu0 0.0
    %654 = vmatpush2.msra.mxu0 0.0
    %655 = vmatprep.subr.mxu0 0.0
    %656 = vmatpush2.msra.mxu0 0.0
    %657 = vmatprep.subr.mxu0 0.0
    %658 = vmatpush2.msra.mxu0 0.0
    %659 = vmatprep.subr.mxu0 0.0
    %660 = vmatpush2.msra.mxu0 0.0
    %661 = vmatprep.subr.mxu0 0.0
    %662 = vmatpush2.msra.mxu0 0.0
    %663 = vmatprep.subr.mxu0 0.0
    %664 = vmatpush2.msra.mxu0 0.0
    %665 = vmatprep.subr.mxu0 0.0
    %666 = vmatpush2.msra.mxu0 0.0
    %667 = vmatprep.subr.mxu0 0.0
    %668 = vmatpush2.msra.mxu0 0.0
    %669 = vmatprep.subr.mxu0 0.0
    %670 = vmatpush2.msra.mxu0 0.0
    %671 = vmatprep.subr.mxu0 0.0
    %672 = vmatpush2.msra.mxu0 0.0
    %673 = vmatprep.subr.mxu0 0.0
    %674 = vmatpush2.msra.mxu0 0.0
    %675 = vmatprep.subr.mxu0 0.0
    %676 = vmatpush2.msra.mxu0 0.0
    %677 = vmatprep.subr.mxu0 0.0
    %678 = vmatpush2.msra.mxu0 0.0
    %679 = vmatprep.subr.mxu0 0.0
    %680 = vmatpush2.msra.mxu0 0.0
    %681 = vmatprep.subr.mxu0 0.0
    %682 = vmatpush2.msra.mxu0 0.0
    %683 = vmatprep.mubr.f32.mxu0 0.0
    %684 = vmatmul.mubr.f32.gmra.mxu0 %v554
    %v685 = vpop.f32.mrf.mxu0
    %v686 = vadd.f32 %v247, %v685
    %v687 = vpop.f32.mrf.mxu0
    %v688 = vadd.f32 %v249, %v687
    %689 = vdwg.mxu0
    %690 = vmatprep.subr.mxu0 %v618
    %691 = vmatpush1.msra.mxu0 %v617
    %692 = vmatprep.subr.mxu0 %v614
    %693 = vmatpush1.msra.mxu0 %v613
    %694 = vmatprep.subr.mxu0 %v610
    %695 = vmatpush1.msra.mxu0 %v609
    %696 = vmatprep.subr.mxu0 %v606
    %697 = vmatpush1.msra.mxu0 %v605
    %698 = vmatprep.subr.mxu0 %v602
    %699 = vmatpush1.msra.mxu0 %v601
    %700 = vmatprep.subr.mxu0 %v598
    %701 = vmatpush1.msra.mxu0 %v597
    %702 = vmatprep.subr.mxu0 %v594
    %703 = vmatpush1.msra.mxu0 %v593
    %704 = vmatprep.subr.mxu0 %v590
    %705 = vmatpush1.msra.mxu0 %v589
    %706 = vmatprep.subr.mxu0 %v586
    %707 = vmatpush1.msra.mxu0 %v585
    %708 = vmatprep.subr.mxu0 %v582
    %709 = vmatpush1.msra.mxu0 %v581
    %710 = vmatprep.subr.mxu0 %v578
    %711 = vmatpush1.msra.mxu0 %v577
    %712 = vmatprep.subr.mxu0 %v574
    %713 = vmatpush1.msra.mxu0 %v573
    %714 = vmatprep.subr.mxu0 %v570
    %715 = vmatpush1.msra.mxu0 %v569
    %716 = vmatprep.subr.mxu0 %v566
    %717 = vmatpush1.msra.mxu0 %v565
    %718 = vmatprep.subr.mxu0 %v562
    %719 = vmatpush1.msra.mxu0 %v561
    %720 = vmatprep.subr.mxu0 %v558
    %721 = vmatpush1.msra.mxu0 %v557
    %722 = vmatprep.subr.mxu0 0.0
    %723 = vmatpush2.msra.mxu0 0.0
    %724 = vmatprep.subr.mxu0 0.0
    %725 = vmatpush2.msra.mxu0 0.0
    %726 = vmatprep.subr.mxu0 0.0
    %727 = vmatpush2.msra.mxu0 0.0
    %728 = vmatprep.subr.mxu0 0.0
    %729 = vmatpush2.msra.mxu0 0.0
    %730 = vmatprep.subr.mxu0 0.0
    %731 = vmatpush2.msra.mxu0 0.0
    %732 = vmatprep.subr.mxu0 0.0
    %733 = vmatpush2.msra.mxu0 0.0
    %734 = vmatprep.subr.mxu0 0.0
    %735 = vmatpush2.msra.mxu0 0.0
    %736 = vmatprep.subr.mxu0 0.0
    %737 = vmatpush2.msra.mxu0 0.0
    %738 = vmatprep.subr.mxu0 0.0
    %739 = vmatpush2.msra.mxu0 0.0
    %740 = vmatprep.subr.mxu0 0.0
    %741 = vmatpush2.msra.mxu0 0.0
    %742 = vmatprep.subr.mxu0 0.0
    %743 = vmatpush2.msra.mxu0 0.0
    %744 = vmatprep.subr.mxu0 0.0
    %745 = vmatpush2.msra.mxu0 0.0
    %746 = vmatprep.subr.mxu0 0.0
    %747 = vmatpush2.msra.mxu0 0.0
    %748 = vmatprep.subr.mxu0 0.0
    %749 = vmatpush2.msra.mxu0 0.0
    %750 = vmatprep.subr.mxu0 0.0
    %751 = vmatpush2.msra.mxu0 0.0
    %752 = vmatprep.subr.mxu0 0.0
    %753 = vmatpush2.msra.mxu0 0.0
    %754 = vmatprep.mubr.f32.mxu0 0.0
    %755 = vmatmul.mubr.f32.gmra.mxu0 %v554
    %v756 = vpop.f32.mrf.mxu0
    %v757 = vadd.f32 %v318, %v756
    %v758 = vpop.f32.mrf.mxu0
    %v759 = vadd.f32 %v320, %v758
    %760 = vdwg.mxu0
    %v761 = vxor.u32 %v686, 2147483648
    %v762 = vxor.u32 %v688, 2147483648
    %v763 = vxor.u32 %v757, 2147483648
    %v764 = vmul.f32 %v761, 1.442695
    %v765 = vpow.pop %v764
    %v766 = vmul.f32 %v762, 1.442695
    %v767 = vpow.pop %v766
    %v768 = vmul.f32 %v763, 1.442695
    %v769 = vpow.pop %v768
    %v770 = vadd.f32 %v765, 1.0
    %v771 = vadd.f32 %v767, 1.0
    %v772 = vadd.f32 %v769, 1.0
    %v773 = vrcp.pop %v770
    %v774 = vmul.f32 1.0, %v773
    %v775 = vrcp.pop %v771
    %v776 = vmul.f32 1.0, %v775
    %v777 = vrcp.pop %v772
    %v778 = vmul.f32 1.0, %v777
    %v779 = vmax.f32 %v759, 0.0
    %v780 = vld [vmem:[#allocation7] sm:$0xff]
    %v781 = vmul.f32 %v776, %v780
    %v782 = vmul.f32 %v774, %v779
    %v783 = vadd.f32 %v781, %v782
    %v784 = vtanh.pop %v783
    %v785 = vmul.f32 %v778, %v784
    %786 = vst [vmem:[#allocation12] sm:$0xff] %v783
    %787 = vst [vmem:[#allocation11] sm:$0xff] %v785
    %s788 = scalar_lea.vmem [#allocation8], 512
    %v789 = vld [vmem:[%s788] sm:$0xff]
    %v790 = vld [vmem:[%s788 + $0x8] sm:$0xff]
    %v791 = vld [vmem:[%s788 + $0x10] sm:$0xff]
    %v792 = vld [vmem:[%s788 + $0x18] sm:$0xff]
    %v793 = vld [vmem:[%s788 + $0x20] sm:$0xff]
    %v794 = vld [vmem:[%s788 + $0x28] sm:$0xff]
    %v795 = vld [vmem:[%s788 + $0x30] sm:$0xff]
    %v796 = vld [vmem:[%s788 + $0x38] sm:$0xff]
    %v797 = vld [vmem:[%s788 + $0x40] sm:$0xff]
    %v798 = vld [vmem:[%s788 + $0x48] sm:$0xff]
    %v799 = vld [vmem:[%s788 + $0x50] sm:$0xff]
    %v800 = vld [vmem:[%s788 + $0x58] sm:$0xff]
    %v801 = vld [vmem:[%s788 + $0x60] sm:$0xff]
    %v802 = vld [vmem:[%s788 + $0x68] sm:$0xff]
    %v803 = vld [vmem:[%s788 + $0x70] sm:$0xff]
    %v804 = vld [vmem:[%s788 + $0x78] sm:$0xff]
    %v805 = vld [vmem:[%s788 + $0x80] sm:$0xff]
    %v806 = vld [vmem:[%s788 + $0x88] sm:$0xff]
    %v807 = vld [vmem:[%s788 + $0x90] sm:$0xff]
    %v808 = vld [vmem:[%s788 + $0x98] sm:$0xff]
    %v809 = vld [vmem:[%s788 + $0xa0] sm:$0xff]
    %v810 = vld [vmem:[%s788 + $0xa8] sm:$0xff]
    %v811 = vld [vmem:[%s788 + $0xb0] sm:$0xff]
    %v812 = vld [vmem:[%s788 + $0xb8] sm:$0xff]
    %v813 = vld [vmem:[%s788 + $0xc0] sm:$0xff]
    %v814 = vld [vmem:[%s788 + $0xc8] sm:$0xff]
    %v815 = vld [vmem:[%s788 + $0xd0] sm:$0xff]
    %v816 = vld [vmem:[%s788 + $0xd8] sm:$0xff]
    %v817 = vld [vmem:[%s788 + $0xe0] sm:$0xff]
    %v818 = vld [vmem:[%s788 + $0xe8] sm:$0xff]
    %v819 = vld [vmem:[%s788 + $0xf0] sm:$0xff]
    %v820 = vld [vmem:[%s788 + $0xf8] sm:$0xff]
    %v821 = vld [vmem:[%s788 + $0x100] sm:$0xff]
    %v822 = vld [vmem:[%s788 + $0x108] sm:$0xff]
    %v823 = vld [vmem:[%s788 + $0x110] sm:$0xff]
    %v824 = vld [vmem:[%s788 + $0x118] sm:$0xff]
    %v825 = vld [vmem:[%s788 + $0x120] sm:$0xff]
    %v826 = vld [vmem:[%s788 + $0x128] sm:$0xff]
    %v827 = vld [vmem:[%s788 + $0x130] sm:$0xff]
    %v828 = vld [vmem:[%s788 + $0x138] sm:$0xff]
    %v829 = vld [vmem:[%s788 + $0x140] sm:$0xff]
    %v830 = vld [vmem:[%s788 + $0x148] sm:$0xff]
    %v831 = vld [vmem:[%s788 + $0x150] sm:$0xff]
    %v832 = vld [vmem:[%s788 + $0x158] sm:$0xff]
    %v833 = vld [vmem:[%s788 + $0x160] sm:$0xff]
    %v834 = vld [vmem:[%s788 + $0x168] sm:$0xff]
    %v835 = vld [vmem:[%s788 + $0x170] sm:$0xff]
    %v836 = vld [vmem:[%s788 + $0x178] sm:$0xff]
    %v837 = vld [vmem:[%s788 + $0x180] sm:$0xff]
    %v838 = vld [vmem:[%s788 + $0x188] sm:$0xff]
    %v839 = vld [vmem:[%s788 + $0x190] sm:$0xff]
    %v840 = vld [vmem:[%s788 + $0x198] sm:$0xff]
    %v841 = vld [vmem:[%s788 + $0x1a0] sm:$0xff]
    %v842 = vld [vmem:[%s788 + $0x1a8] sm:$0xff]
    %v843 = vld [vmem:[%s788 + $0x1b0] sm:$0xff]
    %v844 = vld [vmem:[%s788 + $0x1b8] sm:$0xff]
    %v845 = vld [vmem:[%s788 + $0x1c0] sm:$0xff]
    %v846 = vld [vmem:[%s788 + $0x1c8] sm:$0xff]
    %v847 = vld [vmem:[%s788 + $0x1d0] sm:$0xff]
    %v848 = vld [vmem:[%s788 + $0x1d8] sm:$0xff]
    %v849 = vld [vmem:[%s788 + $0x1e0] sm:$0xff]
    %v850 = vld [vmem:[%s788 + $0x1e8] sm:$0xff]
    %v851 = vld [vmem:[%s788 + $0x1f0] sm:$0xff]
    %v852 = vld [vmem:[%s788 + $0x1f8] sm:$0xff]
    %853 = vmatprep.subr.mxu0 %v850
    %854 = vmatpush1.msra.mxu0 %v849
    %855 = vmatprep.subr.mxu0 %v846
    %856 = vmatpush1.msra.mxu0 %v845
    %857 = vmatprep.subr.mxu0 %v842
    %858 = vmatpush1.msra.mxu0 %v841
    %859 = vmatprep.subr.mxu0 %v838
    %860 = vmatpush1.msra.mxu0 %v837
    %861 = vmatprep.subr.mxu0 %v834
    %862 = vmatpush1.msra.mxu0 %v833
    %863 = vmatprep.subr.mxu0 %v830
    %864 = vmatpush1.msra.mxu0 %v829
    %865 = vmatprep.subr.mxu0 %v826
    %866 = vmatpush1.msra.mxu0 %v825
    %867 = vmatprep.subr.mxu0 %v822
    %868 = vmatpush1.msra.mxu0 %v821
    %869 = vmatprep.subr.mxu0 %v818
    %870 = vmatpush1.msra.mxu0 %v817
    %871 = vmatprep.subr.mxu0 %v814
    %872 = vmatpush1.msra.mxu0 %v813
    %873 = vmatprep.subr.mxu0 %v810
    %874 = vmatpush1.msra.mxu0 %v809
    %875 = vmatprep.subr.mxu0 %v806
    %876 = vmatpush1.msra.mxu0 %v805
    %877 = vmatprep.subr.mxu0 %v802
    %878 = vmatpush1.msra.mxu0 %v801
    %879 = vmatprep.subr.mxu0 %v798
    %880 = vmatpush1.msra.mxu0 %v797
    %881 = vmatprep.subr.mxu0 %v794
    %882 = vmatpush1.msra.mxu0 %v793
    %883 = vmatprep.subr.mxu0 %v790
    %884 = vmatpush1.msra.mxu0 %v789
    %885 = vmatprep.subr.mxu0 0.0
    %886 = vmatpush2.msra.mxu0 0.0
    %887 = vmatprep.subr.mxu0 0.0
    %888 = vmatpush2.msra.mxu0 0.0
    %889 = vmatprep.subr.mxu0 0.0
    %890 = vmatpush2.msra.mxu0 0.0
    %891 = vmatprep.subr.mxu0 0.0
    %892 = vmatpush2.msra.mxu0 0.0
    %893 = vmatprep.subr.mxu0 0.0
    %894 = vmatpush2.msra.mxu0 0.0
    %895 = vmatprep.subr.mxu0 0.0
    %896 = vmatpush2.msra.mxu0 0.0
    %897 = vmatprep.subr.mxu0 0.0
    %898 = vmatpush2.msra.mxu0 0.0
    %899 = vmatprep.subr.mxu0 0.0
    %900 = vmatpush2.msra.mxu0 0.0
    %901 = vmatprep.subr.mxu0 0.0
    %902 = vmatpush2.msra.mxu0 0.0
    %903 = vmatprep.subr.mxu0 0.0
    %904 = vmatpush2.msra.mxu0 0.0
    %905 = vmatprep.subr.mxu0 0.0
    %906 = vmatpush2.msra.mxu0 0.0
    %907 = vmatprep.subr.mxu0 0.0
    %908 = vmatpush2.msra.mxu0 0.0
    %909 = vmatprep.subr.mxu0 0.0
    %910 = vmatpush2.msra.mxu0 0.0
    %911 = vmatprep.subr.mxu0 0.0
    %912 = vmatpush2.msra.mxu0 0.0
    %913 = vmatprep.subr.mxu0 0.0
    %914 = vmatpush2.msra.mxu0 0.0
    %915 = vmatprep.subr.mxu0 0.0
    %916 = vmatpush2.msra.mxu0 0.0
    %917 = vmatprep.mubr.f32.mxu0 0.0
    %918 = vmatmul.mubr.f32.gmra.mxu0 %v785
    %v919 = vpop.f32.mrf.mxu0
    %v920 = vadd.f32 %v479, %v919
    %v921 = vpop.f32.mrf.mxu0
    %v922 = vadd.f32 %v481, %v921
    %923 = vdwg.mxu0
    %924 = vmatprep.subr.mxu0 %v852
    %925 = vmatpush1.msra.mxu0 %v851
    %926 = vmatprep.subr.mxu0 %v848
    %927 = vmatpush1.msra.mxu0 %v847
    %928 = vmatprep.subr.mxu0 %v844
    %929 = vmatpush1.msra.mxu0 %v843
    %930 = vmatprep.subr.mxu0 %v840
    %931 = vmatpush1.msra.mxu0 %v839
    %932 = vmatprep.subr.mxu0 %v836
    %933 = vmatpush1.msra.mxu0 %v835
    %934 = vmatprep.subr.mxu0 %v832
    %935 = vmatpush1.msra.mxu0 %v831
    %936 = vmatprep.subr.mxu0 %v828
    %937 = vmatpush1.msra.mxu0 %v827
    %938 = vmatprep.subr.mxu0 %v824
    %939 = vmatpush1.msra.mxu0 %v823
    %940 = vmatprep.subr.mxu0 %v820
    %941 = vmatpush1.msra.mxu0 %v819
    %942 = vmatprep.subr.mxu0 %v816
    %943 = vmatpush1.msra.mxu0 %v815
    %944 = vmatprep.subr.mxu0 %v812
    %945 = vmatpush1.msra.mxu0 %v811
    %946 = vmatprep.subr.mxu0 %v808
    %947 = vmatpush1.msra.mxu0 %v807
    %948 = vmatprep.subr.mxu0 %v804
    %949 = vmatpush1.msra.mxu0 %v803
    %950 = vmatprep.subr.mxu0 %v800
    %951 = vmatpush1.msra.mxu0 %v799
    %952 = vmatprep.subr.mxu0 %v796
    %953 = vmatpush1.msra.mxu0 %v795
    %954 = vmatprep.subr.mxu0 %v792
    %955 = vmatpush1.msra.mxu0 %v791
    %956 = vmatprep.subr.mxu0 0.0
    %957 = vmatpush2.msra.mxu0 0.0
    %958 = vmatprep.subr.mxu0 0.0
    %959 = vmatpush2.msra.mxu0 0.0
    %960 = vmatprep.subr.mxu0 0.0
    %961 = vmatpush2.msra.mxu0 0.0
    %962 = vmatprep.subr.mxu0 0.0
    %963 = vmatpush2.msra.mxu0 0.0
    %964 = vmatprep.subr.mxu0 0.0
    %965 = vmatpush2.msra.mxu0 0.0
    %966 = vmatprep.subr.mxu0 0.0
    %967 = vmatpush2.msra.mxu0 0.0
    %968 = vmatprep.subr.mxu0 0.0
    %969 = vmatpush2.msra.mxu0 0.0
    %970 = vmatprep.subr.mxu0 0.0
    %971 = vmatpush2.msra.mxu0 0.0
    %972 = vmatprep.subr.mxu0 0.0
    %973 = vmatpush2.msra.mxu0 0.0
    %974 = vmatprep.subr.mxu0 0.0
    %975 = vmatpush2.msra.mxu0 0.0
    %976 = vmatprep.subr.mxu0 0.0
    %977 = vmatpush2.msra.mxu0 0.0
    %978 = vmatprep.subr.mxu0 0.0
    %979 = vmatpush2.msra.mxu0 0.0
    %980 = vmatprep.subr.mxu0 0.0
    %981 = vmatpush2.msra.mxu0 0.0
    %982 = vmatprep.subr.mxu0 0.0
    %983 = vmatpush2.msra.mxu0 0.0
    %984 = vmatprep.subr.mxu0 0.0
    %985 = vmatpush2.msra.mxu0 0.0
    %986 = vmatprep.subr.mxu0 0.0
    %987 = vmatpush2.msra.mxu0 0.0
    %988 = vmatprep.mubr.f32.mxu0 0.0
    %989 = vmatmul.mubr.f32.gmra.mxu0 %v785
    %v990 = vpop.f32.mrf.mxu0
    %v991 = vadd.f32 %v550, %v990
    %v992 = vpop.f32.mrf.mxu0
    %v993 = vadd.f32 %v552, %v992
    %994 = vdwg.mxu0
    %v995 = vxor.u32 %v920, 2147483648
    %v996 = vxor.u32 %v922, 2147483648
    %v997 = vxor.u32 %v991, 2147483648
    %v998 = vmul.f32 %v995, 1.442695
    %v999 = vpow.pop %v998
    %v1000 = vmul.f32 %v996, 1.442695
    %v1001 = vpow.pop %v1000
    %v1002 = vmul.f32 %v997, 1.442695
    %v1003 = vpow.pop %v1002
    %v1004 = vadd.f32 %v999, 1.0
    %v1005 = vadd.f32 %v1001, 1.0
    %v1006 = vadd.f32 %v1003, 1.0
    %v1007 = vrcp.pop %v1004
    %v1008 = vmul.f32 1.0, %v1007
    %v1009 = vrcp.pop %v1005
    %v1010 = vmul.f32 1.0, %v1009
    %v1011 = vrcp.pop %v1006
    %v1012 = vmul.f32 1.0, %v1011
    %v1013 = vmax.f32 %v993, 0.0
    %s1014 = scalar_lea.vmem [#allocation7], 8
    %v1015 = vld [vmem:[%s1014] sm:$0xff]
    %v1016 = vmul.f32 %v1010, %v1015
    %v1017 = vmul.f32 %v1008, %v1013
    %v1018 = vadd.f32 %v1016, %v1017
    %v1019 = vtanh.pop %v1018
    %v1020 = vmul.f32 %v1012, %v1019
    %s1021 = scalar_lea.vmem [#allocation12], 8
    %1022 = vst [vmem:[%s1021] sm:$0xff] %v1018
    %s1023 = scalar_lea.vmem [#allocation11], 8
    %1024 = vst [vmem:[%s1023] sm:$0xff] %v1020
    // Predicated region
    $region46: #{lstm_cell_forward.1} parent=1 // pred_check
      _
    $region47: #{lstm_cell_forward.1} parent=1 // pred_check_branch
      %1026 = sbr.rel (0) target = $region49
    $region48: #{lstm_cell_forward.1} parent=1 // pred_region
      %s1028 = ssub.s32 256, 256
      %1029 = vsyncadd [#allocation4], %s1028
      %s1030 = sshll.u32 [#allocation11], 4
      %s1031 = int_to_ptr.vmem [resolvable:$true] %s1030
      %1036 = dma.vmem_to_hbm [thread:$0]  %s1031, 256, %s6, [#allocation4], 128, 128, 8
    $region49: #{lstm_cell_forward.1} parent=1 // pred_fallthru
      _
    // Predicated region
    $region50: #{lstm_cell_forward.1} parent=1 // pred_check
      _
    $region51: #{lstm_cell_forward.1} parent=1 // pred_check_branch
      %1038 = sbr.rel (0) target = $region53
    $region52: #{lstm_cell_forward.1} parent=1 // pred_region
      %s1040 = ssub.s32 256, 256
      %1041 = vsyncadd [#allocation13], %s1040
      %s1042 = sshll.u32 [#allocation12], 4
      %s1043 = int_to_ptr.vmem [resolvable:$true] %s1042
      %1048 = dma.vmem_to_hbm [thread:$0]  %s1043, 256, %s7, [#allocation13], 128, 128, 8
    $region53: #{lstm_cell_forward.1} parent=1 // pred_fallthru
      _
    // Predicated region
    $region54: #{lstm_cell_forward.1} parent=1 // pred_check
      _
    $region55: #{lstm_cell_forward.1} parent=1 // pred_check_branch
      %1050 = sbr.rel (0) target = $region57
    $region56: #{lstm_cell_forward.1} parent=1 // pred_region
      %1051 = dma.done [#allocation4], 256
    $region57: #{lstm_cell_forward.1} parent=1 // pred_fallthru
      _
    // Predicated region
    $region58: #{lstm_cell_forward.1} parent=1 // pred_check
      _
    $region59: #{lstm_cell_forward.1} parent=1 // pred_check_branch
      %1053 = sbr.rel (0) target = $region61
    $region60: #{lstm_cell_forward.1} parent=1 // pred_region
      %1054 = dma.done [#allocation13], 256
    $region61: #{lstm_cell_forward.1} parent=1 // pred_fallthru
      _
    %1055 = vsyncpa [#allocation3], 1
    %1056 = vsyncpa [#allocation6], 1
    %1057 = vsyncpa [#allocation9], 1
    %1058 = vsyncpa [#allocation4], 1
    %1059 = vsyncpa [#allocation13], 1

</llo_original>
